<compile_context>
chip_gen: v7x
topology: tpu7x:2x2x1
jax: 0.10.0
libtpu: 0.0.40
codegen_flags: <defaults>
</compile_context>

<pallas_src>
import functools

import jax
import jax.numpy as jnp
from jax import lax
from jax.experimental import pallas as pl
from jax.experimental.pallas import tpu as pltpu

LANE = 128     # vreg lane width
GT_ALIGN = 32  # second-minor block granularity (safe for f32/bf16/int8 packing)


def _cdiv(a, b):
    return -(-a // b)


def _round_up(x, m):
    return _cdiv(x, m) * m


def _num_tensorcores():
    """2-way core split only where a chip really has 2 TensorCores (v7x)."""
    try:
        kind = jax.devices()[0].device_kind.lower()
    except Exception:
        return 1
    if "v7" in kind or "7x" in kind:
        return 2
    return 1


def _plan_tiles(g_total, n, itemsize_sum, want_split, gt_override=None):
    """Pick the per-step tile size (in 128-lane groups), step count, core split.

    Targets ~4 MiB of combined input per block (~2 MiB per input) and >= 8
    pipeline steps per core-half, and guarantees the tile count is an exact
    multiple of the core split so no block is DMA'd and thrown away.
    Returns (gt, nt, n_split).
    """
    target_bytes = 4 * 1024 * 1024
    gt_cap = max(GT_ALIGN,
                 (target_bytes // (n * LANE * itemsize_sum)) // GT_ALIGN * GT_ALIGN)
    min_steps = 8 * max(want_split, 1)
    gt_steps = max(GT_ALIGN, _round_up(_cdiv(g_total, min_steps), GT_ALIGN))
    gt = min(gt_cap, gt_steps)
    if gt_override is not None:                       # test/debug hook
        gt = max(8, _round_up(int(gt_override), 8))
    if gt >= g_total:
        return g_total, 1, 1                          # one full-extent block
    nt = _cdiv(g_total, gt)
    n_split = want_split if nt >= want_split else 1
    if n_split > 1 and nt % n_split != 0:
        if gt_override is not None:
            n_split = 1
        else:
            found = None
            t = gt
            while t >= GT_ALIGN:
                if _cdiv(g_total, t) % n_split == 0:
                    found = t
                    break
                t -= GT_ALIGN
            if found is None:
                n_split = 1
            else:
                gt = found
                nt = _cdiv(g_total, gt)
    return gt, nt, n_split


def _dice_partial_kernel(pred_ref, targ_ref, num_ref, den_ref, *,
                         gt, g_total, p_pow, needs_mask):
    """Accumulates lane-dense per-batch partials of sum(p*t) and sum(p^p + t^p).

    pred_ref/targ_ref: (N, gt, 128) tile of the 3D feature view.
    num_ref/den_ref:   (N, 128) f32 accumulators, resident across the feature
                       (j) axis of the grid.
    """
    c = pl.program_id(0)
    j = pl.program_id(1)

    @pl.when(j == 0)
    def _():
        num_ref[...] = jnp.zeros_like(num_ref)
        den_ref[...] = jnp.zeros_like(den_ref)

    def accumulate(mask_tail):
        pr = pred_ref[...].astype(jnp.float32)        # (N, gt, 128)
        tg = targ_ref[...].astype(jnp.float32)
        if mask_tail:
            # Zero the 128-lane groups past the real feature extent (garbage
            # rows of the ragged last block).  Mask BOTH operands so possible
            # NaN/Inf garbage never reaches the products.
            row = (c * pl.num_programs(1) + j) * gt + lax.broadcasted_iota(
                jnp.int32, pr.shape, 1)
            valid = row < g_total
            pr = jnp.where(valid, pr, 0.0)
            tg = jnp.where(valid, tg, 0.0)
        if p_pow == 2:
            den_tile = pr * pr + tg * tg              # pure VALU filler
        else:
            den_tile = pr ** p_pow + tg ** p_pow
        # Reduce over the 128-lane groups (axis 1): cross-vreg vadds plus a
        # tiny sublane collapse; results stay lane-dense (N, 128).
        num_ref[...] += jnp.sum(pr * tg, axis=1)
        den_ref[...] += jnp.sum(den_tile, axis=1)

    if needs_mask:
        glob = c * pl.num_programs(1) + j
        last = pl.num_programs(0) * pl.num_programs(1) - 1

        @pl.when(glob != last)
        def _():
            accumulate(False)                         # fast path, no mask ops

        @pl.when(glob == last)
        def _():
            accumulate(True)                          # only the last tile pays
    else:
        accumulate(False)


def binary_dice_loss(predict, target, *, smooth=1.0, p=2, reduction="mean",
                     gt_override=None, force_split=None):
    assert predict.shape[0] == target.shape[0], \
        "predict & target batch size don't match"
    n = predict.shape[0]

    def _as2d(x):
        x2 = x.reshape(n, -1)
        dt = x2.dtype
        if jnp.issubdtype(dt, jnp.floating):
            return x2                                 # keep bf16/f32 as given
        if jnp.issubdtype(dt, jnp.bool_) or dt.itemsize <= 2:
            # 0/1 masks (and int8/uint8 values) are exact in bf16; half the
            # HBM traffic of a float32 widen.
            return x2.astype(jnp.bfloat16)
        return x2.astype(jnp.float32)

    pred2d = _as2d(predict)
    targ2d = _as2d(target)
    assert pred2d.shape == targ2d.shape, "predict & target shapes don't match"
    d = pred2d.shape[1]

    g_total = _cdiv(d, LANE)
    pad = g_total * LANE - d
    if pad:
        # Rare ragged-D case: zero padding is exact for num and den (zeros
        # contribute nothing); aligned D takes the free-bitcast path below.
        pred2d = jnp.pad(pred2d, ((0, 0), (0, pad)))
        targ2d = jnp.pad(targ2d, ((0, 0), (0, pad)))

    # Free reshape: each 128-lane group of a batch row becomes a sublane-row,
    # so vregs are fully packed regardless of N and the per-tile reduction is
    # lane-dense.
    pred3d = pred2d.reshape(n, g_total, LANE)
    targ3d = targ2d.reshape(n, g_total, LANE)

    itemsize_sum = pred3d.dtype.itemsize + targ3d.dtype.itemsize
    want_split = _num_tensorcores() if force_split is None else int(force_split)
    gt, nt, n_split = _plan_tiles(g_total, n, itemsize_sum, want_split,
                                  gt_override)
    steps = nt // n_split
    needs_mask = (g_total % gt != 0)

    def in_idx(c, j, _s=steps):
        return (0, c * _s + j, 0)

    out_spec = pl.BlockSpec((None, n, LANE), lambda c, j: (c, 0, 0))

    kernel = functools.partial(_dice_partial_kernel, gt=gt, g_total=g_total,
                               p_pow=p, needs_mask=needs_mask)

    num_parts, den_parts = pl.pallas_call(
        kernel,
        out_shape=(jax.ShapeDtypeStruct((n_split, n, LANE), jnp.float32),
                   jax.ShapeDtypeStruct((n_split, n, LANE), jnp.float32)),
        grid_spec=pltpu.PrefetchScalarGridSpec(
            num_scalar_prefetch=0,
            grid=(n_split, steps),
            in_specs=[pl.BlockSpec((n, gt, LANE), in_idx),
                      pl.BlockSpec((n, gt, LANE), in_idx)],
            out_specs=(out_spec, out_spec),
        ),
        compiler_params=pltpu.CompilerParams(
            dimension_semantics=("parallel", "arbitrary")),
    )(pred3d, targ3d)

    # Tiny epilogue in plain JAX (O(N*128) scalars).
    num = jnp.sum(num_parts, axis=(0, 2)) + smooth    # (N,)
    den = jnp.sum(den_parts, axis=(0, 2)) + smooth
    loss = 1.0 - num / den

    if reduction == "mean":
        return loss.mean()
    elif reduction == "sum":
        return loss.sum()
    elif reduction == "none":
        return loss
    else:
        raise Exception("Unexpected reduction {}".format(reduction))


def _reference(predict, target, smooth=1.0, p=2, reduction="mean"):
    n = predict.shape[0]
    pr = predict.reshape(n, -1).astype(jnp.float32)
    tg = target.reshape(n, -1).astype(jnp.float32)
    num = jnp.sum(pr * tg, axis=1) + smooth
    den = jnp.sum(pr ** p + tg ** p, axis=1) + smooth
    loss = 1.0 - num / den
    if reduction == "mean":
        return loss.mean()
    if reduction == "sum":
        return loss.sum()
    return loss


if __name__ == "__main__":
    key = jax.random.PRNGKey(0)
    k1, k2, k3, k4 = jax.random.split(key, 4)

    # Test 1: canonical NCHW float32 input (D % 128 == 0, single block),
    # reduction='mean'.
    predict = jax.nn.sigmoid(jax.random.normal(k1, (2, 4, 16, 16), jnp.float32))
    target = (jax.random.uniform(k2, (2, 4, 16, 16)) > 0.5).astype(jnp.float32)
    loss = binary_dice_loss(predict, target, smooth=1.0, p=2, reduction="mean")
    jax.block_until_ready(loss)
    ref = _reference(predict, target, 1.0, 2, "mean")
    assert jnp.allclose(loss, ref, atol=1e-5, rtol=1e-5), (loss, ref)

    # Test 2: bf16 inputs, ragged D (= 5*7*121 = 4235 -> padded to 34 lane
    # groups), multi-step grid with the gated mask on the last tile only,
    # reduction='none'.
    p2 = jax.nn.sigmoid(
        jax.random.normal(k3, (3, 5, 7, 121), jnp.float32)).astype(jnp.bfloat16)
    t2 = (jax.random.uniform(k4, (3, 5, 7, 121)) > 0.5).astype(jnp.bfloat16)
    l2 = binary_dice_loss(p2, t2, smooth=1.0, p=2, reduction="none")
    jax.block_until_ready(l2)
    r2 = _reference(p2, t2, 1.0, 2, "none")
    assert jnp.allclose(l2, r2, atol=1e-4, rtol=1e-4), (l2, r2)

    # Test 3: forced small tile -> multi-step reduction with no mask,
    # reduction='sum'.
    p3 = jax.nn.sigmoid(jax.random.normal(k1, (2, 6144), jnp.float32))
    t3 = (jax.random.uniform(k2, (2, 6144)) > 0.5).astype(jnp.float32)
    l3 = binary_dice_loss(p3, t3, smooth=1.0, p=2, reduction="sum",
                          gt_override=16)
    jax.block_until_ready(l3)
    r3 = _reference(p3, t3, 1.0, 2, "sum")
    assert jnp.allclose(l3, r3, atol=1e-5, rtol=1e-5), (l3, r3)

    # Test 4: force the 2-way core split (grid (2, steps), cross-half
    # combination in the epilogue), reduction='none'.
    p4 = jax.nn.sigmoid(jax.random.normal(k3, (4, 12288), jnp.float32))
    t4 = (jax.random.uniform(k4, (4, 12288)) > 0.5).astype(jnp.float32)
    l4 = binary_dice_loss(p4, t4, smooth=1.0, p=2, reduction="none",
                          gt_override=16, force_split=2)
    jax.block_until_ready(l4)
    r4 = _reference(p4, t4, 1.0, 2, "none")
    assert jnp.allclose(l4, r4, atol=1e-5, rtol=1e-5), (l4, r4)

    print("KERNEL_OK")
</pallas_src>

<mosaic_0001>
module attributes {stable_mosaic.version = 11 : i64} {
  func.func @_dice_partial_kernel(%arg0: i32, %arg1: i32, %arg2: memref<2x8x128xf32, #tpu.memory_space<vmem>>, %arg3: memref<2x8x128xf32, #tpu.memory_space<vmem>>, %arg4: memref<1x2x128xf32, #tpu.memory_space<vmem>>, %arg5: memref<1x2x128xf32, #tpu.memory_space<vmem>>) attributes {dimension_semantics = [#tpu.dimension_semantics<parallel>, #tpu.dimension_semantics<arbitrary>], iteration_bounds = array<i64: 1, 1>, scalar_prefetch = 0 : i64, scratch_operands = 0 : i64, tpu.core_type = #tpu.core_type<tc>, window_params = [{transform_indices = @transform_0, window_bounds = array<i64: 2, 8, 128>}, {transform_indices = @transform_1, window_bounds = array<i64: 2, 8, 128>}, {transform_indices = @transform_2, window_bounds = array<i64: 1, 2, 128>}, {transform_indices = @transform_3, window_bounds = array<i64: 1, 2, 128>}]} {
    %c0_i32 = arith.constant 0 : i32
    %0 = arith.cmpi eq, %arg1, %c0_i32 : i32
    %1 = arith.extui %0 : i1 to i32
    %c0_i32_0 = arith.constant 0 : i32
    %2 = arith.cmpi ne, %1, %c0_i32_0 : i32
    scf.if %2 {
      %cst_19 = arith.constant 0.000000e+00 : f32
      %23 = vector.broadcast %cst_19 : f32 to vector<2x128xf32>
      %c0_20 = arith.constant 0 : index
      %c0_21 = arith.constant 0 : index
      %c0_22 = arith.constant 0 : index
      %24 = vector.load %arg4[%c0_20, %c0_21, %c0_22] : memref<1x2x128xf32, #tpu.memory_space<vmem>>, vector<1x2x128xf32>
      %25 = vector.shape_cast %24 : vector<1x2x128xf32> to vector<2x128xf32>
      %26 = vector.shape_cast %23 : vector<2x128xf32> to vector<1x2x128xf32>
      tpu.vector_store %arg4[%c0_20, %c0_21, %c0_22], %26 {strides = array<i32>} : memref<1x2x128xf32, #tpu.memory_space<vmem>>, vector<1x2x128xf32>,
      %cst_23 = arith.constant 0.000000e+00 : f32
      %27 = vector.broadcast %cst_23 : f32 to vector<2x128xf32>
      %c0_24 = arith.constant 0 : index
      %c0_25 = arith.constant 0 : index
      %c0_26 = arith.constant 0 : index
      %28 = vector.load %arg5[%c0_24, %c0_25, %c0_26] : memref<1x2x128xf32, #tpu.memory_space<vmem>>, vector<1x2x128xf32>
      %29 = vector.shape_cast %28 : vector<1x2x128xf32> to vector<2x128xf32>
      %30 = vector.shape_cast %27 : vector<2x128xf32> to vector<1x2x128xf32>
      tpu.vector_store %arg5[%c0_24, %c0_25, %c0_26], %30 {strides = array<i32>} : memref<1x2x128xf32, #tpu.memory_space<vmem>>, vector<1x2x128xf32>,
    } else {
    }
    %c0 = arith.constant 0 : index
    %c0_1 = arith.constant 0 : index
    %c0_2 = arith.constant 0 : index
    %3 = vector.load %arg2[%c0, %c0_1, %c0_2] : memref<2x8x128xf32, #tpu.memory_space<vmem>>, vector<2x8x128xf32>
    %c0_3 = arith.constant 0 : index
    %c0_4 = arith.constant 0 : index
    %c0_5 = arith.constant 0 : index
    %4 = vector.load %arg3[%c0_3, %c0_4, %c0_5] : memref<2x8x128xf32, #tpu.memory_space<vmem>>, vector<2x8x128xf32>
    %5 = arith.mulf %3, %3 : vector<2x8x128xf32>
    %6 = arith.mulf %4, %4 : vector<2x8x128xf32>
    %7 = arith.addf %5, %6 : vector<2x8x128xf32>
    %c0_6 = arith.constant 0 : index
    %c0_7 = arith.constant 0 : index
    %c0_8 = arith.constant 0 : index
    %8 = vector.load %arg4[%c0_6, %c0_7, %c0_8] : memref<1x2x128xf32, #tpu.memory_space<vmem>>, vector<1x2x128xf32>
    %9 = vector.shape_cast %8 : vector<1x2x128xf32> to vector<2x128xf32>
    %10 = arith.mulf %3, %4 : vector<2x8x128xf32>
    %cst = arith.constant dense<0.000000e+00> : vector<2x128xf32>
    %11 = vector.multi_reduction <add>, %10, %cst [1] : vector<2x8x128xf32> to vector<2x128xf32>
    %12 = arith.addf %9, %11 : vector<2x128xf32>
    %c0_9 = arith.constant 0 : index
    %c0_10 = arith.constant 0 : index
    %c0_11 = arith.constant 0 : index
    %13 = vector.load %arg4[%c0_9, %c0_10, %c0_11] : memref<1x2x128xf32, #tpu.memory_space<vmem>>, vector<1x2x128xf32>
    %14 = vector.shape_cast %13 : vector<1x2x128xf32> to vector<2x128xf32>
    %15 = vector.shape_cast %12 : vector<2x128xf32> to vector<1x2x128xf32>
    tpu.vector_store %arg4[%c0_9, %c0_10, %c0_11], %15 {strides = array<i32>} : memref<1x2x128xf32, #tpu.memory_space<vmem>>, vector<1x2x128xf32>,
    %c0_12 = arith.constant 0 : index
    %c0_13 = arith.constant 0 : index
    %c0_14 = arith.constant 0 : index
    %16 = vector.load %arg5[%c0_12, %c0_13, %c0_14] : memref<1x2x128xf32, #tpu.memory_space<vmem>>, vector<1x2x128xf32>
    %17 = vector.shape_cast %16 : vector<1x2x128xf32> to vector<2x128xf32>
    %cst_15 = arith.constant dense<0.000000e+00> : vector<2x128xf32>
    %18 = vector.multi_reduction <add>, %7, %cst_15 [1] : vector<2x8x128xf32> to vector<2x128xf32>
    %19 = arith.addf %17, %18 : vector<2x128xf32>
    %c0_16 = arith.constant 0 : index
    %c0_17 = arith.constant 0 : index
    %c0_18 = arith.constant 0 : index
    %20 = vector.load %arg5[%c0_16, %c0_17, %c0_18] : memref<1x2x128xf32, #tpu.memory_space<vmem>>, vector<1x2x128xf32>
    %21 = vector.shape_cast %20 : vector<1x2x128xf32> to vector<2x128xf32>
    %22 = vector.shape_cast %19 : vector<2x128xf32> to vector<1x2x128xf32>
    tpu.vector_store %arg5[%c0_16, %c0_17, %c0_18], %22 {strides = array<i32>} : memref<1x2x128xf32, #tpu.memory_space<vmem>>, vector<1x2x128xf32>,
    return
  }
  func.func @transform_0(%arg0: i32, %arg1: i32) -> (i32, i32, i32) {
    %c1_i32 = arith.constant 1 : i32
    %0 = arith.muli %arg0, %c1_i32 : i32
    %1 = arith.addi %0, %arg1 : i32
    %c0_i32 = arith.constant 0 : i32
    %c0_i32_0 = arith.constant 0 : i32
    %c0_i32_1 = arith.constant 0 : i32
    return %c0_i32, %1, %c0_i32_0 : i32, i32, i32
  }
  func.func @transform_1(%arg0: i32, %arg1: i32) -> (i32, i32, i32) {
    %c1_i32 = arith.constant 1 : i32
    %0 = arith.muli %arg0, %c1_i32 : i32
    %1 = arith.addi %0, %arg1 : i32
    %c0_i32 = arith.constant 0 : i32
    %c0_i32_0 = arith.constant 0 : i32
    %c0_i32_1 = arith.constant 0 : i32
    return %c0_i32, %1, %c0_i32_0 : i32, i32, i32
  }
  func.func @transform_2(%arg0: i32, %arg1: i32) -> (i32, i32, i32) {
    %c0_i32 = arith.constant 0 : i32
    %c0_i32_0 = arith.constant 0 : i32
    %c0_i32_1 = arith.constant 0 : i32
    return %arg0, %c0_i32, %c0_i32_0 : i32, i32, i32
  }
  func.func @transform_3(%arg0: i32, %arg1: i32) -> (i32, i32, i32) {
    %c0_i32 = arith.constant 0 : i32
    %c0_i32_0 = arith.constant 0 : i32
    %c0_i32_1 = arith.constant 0 : i32
    return %arg0, %c0_i32, %c0_i32_0 : i32, i32, i32
  }
}

</mosaic_0001>

<llo_original>
// kernel: tpu_custom_call.1
$region0: #{tpu_custom_call.1}
  #allocation0 [shape = 'u32[]', space=smem, size = 0x4, offset = 0x4, fixed_abs, tag = 'smem constant byte address 0x4 - core index']
  #allocation1 [shape = 'u32[144,128]{1,0:T(1,128)}', space=vmem, size = 0x12000, scoped, tag = 'internal scratch']
  %s0 = inlined_call_operand.hbm [shape: f32[2,8,128], index: 0, kind: input, shape index: {}]
  %s1 = inlined_call_operand.hbm [shape: f32[2,8,128], index: 1, kind: input, shape index: {}]
  %s2 = inlined_call_operand.hbm [shape: f32[1,2,128], index: 2, kind: output, shape index: {0}]
  %s3 = inlined_call_operand.hbm [shape: f32[1,2,128], index: 3, kind: output, shape index: {1}]
  %4 = xla_tuple %s2, %s3
  %s5 = sld [smem:[#allocation0]]
  $region38: #{tpu_custom_call.1} parent=0
    _
  %s7 = ssub.s32 1, %s5
  %s8 = scalar_select 0, %s7, %s5
  $region1: #{tpu_custom_call.1} parent=0
    #allocation2 [shape = 'u8[8192]{0}', space=vmem, size = 0x2000, scoped, tag = 'input window, operand 0, single buffered']
    #allocation3 [shape = 's32[1]{0}', space=sflag, size = 0x4, scoped, tag = 'scoped memory for tpu_custom_call.1']
    #allocation4 [shape = 's32[1]{0}', space=sflag, size = 0x4, scoped, tag = 'scoped memory for tpu_custom_call.1']
    #allocation5 [shape = 'u8[8192]{0}', space=vmem, size = 0x2000, scoped, tag = 'input window, operand 1, single buffered']
    #allocation6 [shape = 's32[1]{0}', space=sflag, size = 0x4, scoped, tag = 'scoped memory for tpu_custom_call.1']
    #allocation7 [shape = 'u8[1024]{0}', space=vmem, size = 0x400, scoped, tag = 'output window, operand 0, single buffered']
    #allocation8 [shape = 'u8[1024]{0}', space=vmem, size = 0x400, scoped, tag = 'output window, operand 1, single buffered']
    #allocation9 [shape = 's32[1]{0}', space=sflag, size = 0x4, scoped, tag = 'scoped memory for tpu_custom_call.1']
    %9 = vsyncpa [#allocation3], 0
    %10 = vsyncpa [#allocation6], 0
    %11 = vsyncpa [#allocation4], 0
    %12 = vsyncpa [#allocation9], 0
    // Predicated region
    $region2: #{tpu_custom_call.1} parent=1 // pred_check
      _
    $region3: #{tpu_custom_call.1} parent=1 // pred_check_branch
      %14 = sbr.rel (0) target = $region5
    $region4: #{tpu_custom_call.1} parent=1 // pred_region
      %s15 = sadd.s32 0, 0
      %s17 = ssub.s32 256, 256
      %18 = vsyncadd [#allocation3], %s17
      %s19 = smul.addr %s15, 128
      %s20 = scalar_lea.hbm %s0, %s19
      %s21 = sshll.u32 [#allocation2], 4
      %s22 = int_to_ptr.vmem [resolvable:$true] %s21
      %27 = dma.hbm_to_vmem [thread:$0]  %s20, 256, %s22, [#allocation3], 128, 128, 8
    $region5: #{tpu_custom_call.1} parent=1 // pred_fallthru
      _
    // Predicated region
    $region6: #{tpu_custom_call.1} parent=1 // pred_check
      _
    $region7: #{tpu_custom_call.1} parent=1 // pred_check_branch
      %29 = sbr.rel (0) target = $region9
    $region8: #{tpu_custom_call.1} parent=1 // pred_region
      %s30 = sadd.s32 0, 0
      %s32 = ssub.s32 256, 256
      %33 = vsyncadd [#allocation6], %s32
      %s34 = smul.addr %s30, 128
      %s35 = scalar_lea.hbm %s1, %s34
      %s36 = sshll.u32 [#allocation5], 4
      %s37 = int_to_ptr.vmem [resolvable:$true] %s36
      %42 = dma.hbm_to_vmem [thread:$0]  %s35, 256, %s37, [#allocation6], 128, 128, 8
    $region9: #{tpu_custom_call.1} parent=1 // pred_fallthru
      _
    // Predicated region
    $region10: #{tpu_custom_call.1} parent=1 // pred_check
      _
    $region11: #{tpu_custom_call.1} parent=1 // pred_check_branch
      %44 = sbr.rel (0) target = $region13
    $region12: #{tpu_custom_call.1} parent=1 // pred_region
      %45 = dma.done [#allocation3], 256
    $region13: #{tpu_custom_call.1} parent=1 // pred_fallthru
      _
    // Predicated region
    $region14: #{tpu_custom_call.1} parent=1 // pred_check
      _
    $region15: #{tpu_custom_call.1} parent=1 // pred_check_branch
      %47 = sbr.rel (0) target = $region17
    $region16: #{tpu_custom_call.1} parent=1 // pred_region
      %48 = dma.done [#allocation6], 256
    $region17: #{tpu_custom_call.1} parent=1 // pred_fallthru
      _
    %s49 = sadd.s32 0, 0
    %s50 = sadd.s32 0, 0
    %p51 = scmp.eq.s32.totalorder 0, 0
    // Predicated region
    $region18: #{tpu_custom_call.1} parent=1 // pred_check
      %p52 = pneg %p51
    $region19: #{tpu_custom_call.1} parent=1 // pred_check_branch
      %54 = sbr.rel (%p52) target = $region21
    $region20: #{tpu_custom_call.1} parent=1 // pred_region
      %55 = vst [vmem:[#allocation7] sm:$0x3] 0.0
      %56 = vst [vmem:[#allocation8] sm:$0x3] 0.0
    $region21: #{tpu_custom_call.1} parent=1 // pred_fallthru
      _
    %v57 = vld [vmem:[#allocation2] sm:$0xff]
    %v58 = vld [vmem:[#allocation2 + $0x8] sm:$0xff]
    %v59 = vld [vmem:[#allocation5] sm:$0xff]
    %v60 = vld [vmem:[#allocation5 + $0x8] sm:$0xff]
    %v61 = vmul.f32 %v57, %v57
    %v62 = vmul.f32 %v58, %v58
    %v63 = vmul.f32 %v59, %v59
    %v64 = vmul.f32 %v60, %v60
    %v65 = vadd.f32 %v61, %v63
    %v66 = vadd.f32 %v62, %v64
    %v67 = vld [vmem:[#allocation7] sm:$0x3]
    %v68 = vmul.f32 %v57, %v59
    %v69 = vmul.f32 %v58, %v60
    %v70 = vrot.slane %v68, 4
    %v71 = vadd.f32 %v68, %v70
    %v72 = vrot.slane %v71, 2
    %v73 = vadd.f32 %v71, %v72
    %v74 = vrot.slane %v73, 1
    %v75 = vadd.f32 %v73, %v74
    %v76 = vrot.slane %v69, 4
    %v77 = vadd.f32 %v69, %v76
    %v78 = vrot.slane %v77, 2
    %v79 = vadd.f32 %v77, %v78
    %v80 = vrot.slane %v79, 1
    %v81 = vadd.f32 %v79, %v80
    %vm84 = vcmask 1041409
    %v85 = vsel %vm84, %v81, %v75
    %v87 = vadd.f32 %v67, %v85
    %88 = vst [vmem:[#allocation7] sm:$0x3] %v87
    %v89 = vld [vmem:[#allocation8] sm:$0x3]
    %v90 = vrot.slane %v65, 4
    %v91 = vadd.f32 %v65, %v90
    %v92 = vrot.slane %v91, 2
    %v93 = vadd.f32 %v91, %v92
    %v94 = vrot.slane %v93, 1
    %v95 = vadd.f32 %v93, %v94
    %v96 = vrot.slane %v66, 4
    %v97 = vadd.f32 %v66, %v96
    %v98 = vrot.slane %v97, 2
    %v99 = vadd.f32 %v97, %v98
    %v100 = vrot.slane %v99, 1
    %v101 = vadd.f32 %v99, %v100
    %v104 = vsel %vm84, %v101, %v95
    %v106 = vadd.f32 %v89, %v104
    %107 = vst [vmem:[#allocation8] sm:$0x3] %v106
    // Predicated region
    $region22: #{tpu_custom_call.1} parent=1 // pred_check
      _
    $region23: #{tpu_custom_call.1} parent=1 // pred_check_branch
      %109 = sbr.rel (0) target = $region25
    $region24: #{tpu_custom_call.1} parent=1 // pred_region
      %s111 = ssub.s32 32, 32
      %112 = vsyncadd [#allocation4], %s111
      %s114 = sshll.u32 [#allocation7], 4
      %s115 = int_to_ptr.vmem [resolvable:$true] %s114
      %117 = dma.vmem_to_hbm [thread:$0]  %s115, 32, %s2, [#allocation4]
    $region25: #{tpu_custom_call.1} parent=1 // pred_fallthru
      _
    // Predicated region
    $region26: #{tpu_custom_call.1} parent=1 // pred_check
      _
    $region27: #{tpu_custom_call.1} parent=1 // pred_check_branch
      %119 = sbr.rel (0) target = $region29
    $region28: #{tpu_custom_call.1} parent=1 // pred_region
      %s121 = ssub.s32 32, 32
      %122 = vsyncadd [#allocation9], %s121
      %s124 = sshll.u32 [#allocation8], 4
      %s125 = int_to_ptr.vmem [resolvable:$true] %s124
      %127 = dma.vmem_to_hbm [thread:$0]  %s125, 32, %s3, [#allocation9]
    $region29: #{tpu_custom_call.1} parent=1 // pred_fallthru
      _
    // Predicated region
    $region30: #{tpu_custom_call.1} parent=1 // pred_check
      _
    $region31: #{tpu_custom_call.1} parent=1 // pred_check_branch
      %129 = sbr.rel (0) target = $region33
    $region32: #{tpu_custom_call.1} parent=1 // pred_region
      %130 = dma.done [#allocation4], 32
    $region33: #{tpu_custom_call.1} parent=1 // pred_fallthru
      _
    // Predicated region
    $region34: #{tpu_custom_call.1} parent=1 // pred_check
      _
    $region35: #{tpu_custom_call.1} parent=1 // pred_check_branch
      %132 = sbr.rel (0) target = $region37
    $region36: #{tpu_custom_call.1} parent=1 // pred_region
      %133 = dma.done [#allocation9], 32
    $region37: #{tpu_custom_call.1} parent=1 // pred_fallthru
      _
    %134 = vsyncpa [#allocation3], 1
    %135 = vsyncpa [#allocation6], 1
    %136 = vsyncpa [#allocation4], 1
    %137 = vsyncpa [#allocation9], 1

</llo_original>
